<compile_context>
chip_gen: v6e
topology: v6e:2x2x1
jax: 0.10.0
libtpu: 0.0.40
codegen_flags: <defaults>
</compile_context>

<pallas_src>
import numpy as np
import jax
import jax.numpy as jnp
from jax.experimental import pallas as pl
from jax.experimental.pallas import tpu as pltpu

LANE = 128
ROW_ALIGN = 16          # bf16 packs 16 sublanes per vreg


def _round_up(x, m):
    return (x + m - 1) // m * m


def _silu_f32(x):
    return x * jax.nn.sigmoid(x)


def _pick_row_tile(n):
    # Bigger tiles amortize the ~0.35us per-grid-step overhead and feed the MXU.
    if n >= 2048:
        return 2048
    if n >= 1024:
        return 1024
    if n >= 512:
        return 512
    return _round_up(n, ROW_ALIGN)


# --------------------------- Pallas kernels ---------------------------------

def fused_embed_proj_kernel(
        f_ref, vs_ref, m_ref,
        fw1_ref, fb1_ref, wfp_ref, pb1_ref,
        pw2_ref, pb2_ref, pw3_ref, pb3_ref,
        o_ref):
    # f_embedding layer 1: Linear(F,H) -> SiLU
    t = jnp.dot(f_ref[...], fw1_ref[...],
                preferred_element_type=jnp.float32) + fb1_ref[...]
    t = _silu_f32(t)

    # projection layer 1 with f_w2 folded into p_w1[H:2H]  (W' = f_w2 @ p_w1_f)
    # and the v/size embedding contributions pre-multiplied by p_w1 slices
    # (supplied as one gathered bf16 stream vs_ref):
    #   c = silu(f@fw1+fb1) @ W' + (v@p_w1_v + s@p_w1_s) + (p_b1 + f_b2@p_w1_f)
    c = jnp.dot(t.astype(jnp.bfloat16), wfp_ref[...],
                preferred_element_type=jnp.float32)
    c = c + vs_ref[...].astype(jnp.float32) + pb1_ref[...]
    c = _silu_f32(c)

    # projection layers 2 and 3
    c = jnp.dot(c.astype(jnp.bfloat16), pw2_ref[...],
                preferred_element_type=jnp.float32) + pb2_ref[...]
    c = _silu_f32(c)
    c = jnp.dot(c.astype(jnp.bfloat16), pw3_ref[...],
                preferred_element_type=jnp.float32) + pb3_ref[...]

    # h = projection(combined) * mask   (bf16 writeback)
    o_ref[...] = (c * m_ref[...]).astype(o_ref.dtype)


def output_head_kernel(h_ref, val_ref, wh_ref, wv_ref, b1_ref, w2_ref, b2_ref,
                       o_ref):
    # Linear(H+1,H) with o_w1 split into W_h and w_val: h@W_h + val*w_val + b1
    t = jnp.dot(h_ref[...], wh_ref[...], preferred_element_type=jnp.float32)
    t = t + val_ref[...] * wv_ref[...] + b1_ref[...]
    t = _silu_f32(t)
    o_ref[...] = jnp.dot(t.astype(jnp.bfloat16), w2_ref[...],
                         preferred_element_type=jnp.float32) + b2_ref[...]


# --------------------------- Pallas wrappers ---------------------------------

def run_embed_projection(f2d, vs2d, m2d, p, tm):
    """Fused f_embedding + projection + mask over a row-tiled grid (4 matmuls)."""
    NP, FP = f2d.shape
    P3 = vs2d.shape[1]
    HP = p["p_w3"].shape[0]
    grid = (NP // tm,)

    row = lambda i: (i, 0)
    const = lambda i: (0, 0)       # weights stay VMEM-resident across row tiles
    # NOTE: at H>=512 consider pipeline_mode=pl.Buffered(1) on the const weight
    # specs (they are never re-DMA'd) and re-derive the budget vs v7x's 64 MiB.

    return pl.pallas_call(
        fused_embed_proj_kernel,
        out_shape=jax.ShapeDtypeStruct((NP, HP), jnp.bfloat16),
        grid=grid,
        in_specs=[
            pl.BlockSpec((tm, FP), row),
            pl.BlockSpec((tm, P3), row),
            pl.BlockSpec((tm, 1), row),
            pl.BlockSpec((FP, HP), const), pl.BlockSpec((1, HP), const),
            pl.BlockSpec((HP, P3), const), pl.BlockSpec((1, P3), const),
            pl.BlockSpec((P3, HP), const), pl.BlockSpec((1, HP), const),
            pl.BlockSpec((HP, HP), const), pl.BlockSpec((1, HP), const),
        ],
        out_specs=pl.BlockSpec((tm, HP), row),
        compiler_params=pltpu.CompilerParams(
            dimension_semantics=("parallel",),
            vmem_limit_bytes=32 * 1024 * 1024),
    )(f2d, vs2d, m2d,
      p["f_w1"], p["f_b1"], p["w_fp"], p["p_b1"],
      p["p_w2"], p["p_b2"], p["p_w3"], p["p_b3"])


def run_output_head(h_pred, val2d, p):
    """Output MLP on the (tiny) batch of predicted nodes; whole arrays in VMEM."""
    B = h_pred.shape[0]
    VP = p["o_w2"].shape[1]
    vspec = pl.BlockSpec(memory_space=pltpu.MemorySpace.VMEM)
    return pl.pallas_call(
        output_head_kernel,
        out_shape=jax.ShapeDtypeStruct((B, VP), jnp.float32),
        in_specs=[vspec] * 7,
        out_specs=vspec,
    )(h_pred, val2d, p["o_wh"], p["o_wv"], p["o_b1"], p["o_w2"], p["o_b2"])


# --------------------------- Parameters --------------------------------------

def init_params(key, vocab_size, feature_size, hidden_size):
    """Logical (unpadded, f32) parameters matching the PyTorch module layout."""
    H = hidden_size
    keys = jax.random.split(key, 16)
    sc = 0.02

    def w(k, shape):
        return (sc * jax.random.normal(k, shape)).astype(jnp.float32)

    return {
        "v_table": w(keys[0], (vocab_size + 1, H)),
        "size_table": w(keys[1], (26, H)),
        "f_w1": w(keys[2], (feature_size, H)), "f_b1": w(keys[3], (H,)),
        "f_w2": w(keys[4], (H, H)),            "f_b2": w(keys[5], (H,)),
        "p_w1": w(keys[6], (3 * H, 3 * H)),    "p_b1": w(keys[7], (3 * H,)),
        "p_w2": w(keys[8], (3 * H, H)),        "p_b2": w(keys[9], (H,)),
        "p_w3": w(keys[10], (H, H)),           "p_b3": w(keys[11], (H,)),
        "o_w1": w(keys[12], (H + 1, H)),       "o_b1": w(keys[13], (H,)),
        "o_w2": w(keys[14], (H, vocab_size)),  "o_b2": w(keys[15], (vocab_size,)),
    }


def _pad2d(a, rows, cols, dtype):
    out = jnp.zeros((rows, cols), dtype)
    return out.at[:a.shape[0], :a.shape[1]].set(a.astype(dtype))


def prepare_padded_params(p, feature_size, hidden_size, vocab_size):
    """Offline weight folding (in f32) + lane padding to 128 + bf16 cast."""
    H, F, V = hidden_size, feature_size, vocab_size
    HP = _round_up(H, LANE)
    FP = _round_up(F, LANE)
    P3 = _round_up(3 * H, LANE)
    VP = _round_up(V, LANE)
    bf, f32 = jnp.bfloat16, jnp.float32

    pw1_v = p["p_w1"][:H]          # (H, 3H)
    pw1_f = p["p_w1"][H:2 * H]     # (H, 3H)
    pw1_s = p["p_w1"][2 * H:]      # (H, 3H)

    # Exact algebraic folds (no nonlinearity in between), done in f32:
    v_table_p = p["v_table"] @ pw1_v              # (V+1, 3H)
    s_table_p = p["size_table"] @ pw1_s           # (26,  3H)
    w_fp = p["f_w2"] @ pw1_f                      # (H,   3H)
    b1_fold = p["p_b1"] + p["f_b2"] @ pw1_f       # (3H,)

    return {
        # pre-projected embedding tables, stored bf16 so gathers yield bf16
        "v_table_p": _pad2d(v_table_p, v_table_p.shape[0], P3, bf),
        "size_table_p": _pad2d(s_table_p, 26, P3, bf),
        # fused MLP weights
        "f_w1": _pad2d(p["f_w1"], FP, HP, bf),
        "f_b1": _pad2d(p["f_b1"][None, :], 1, HP, f32),
        "w_fp": _pad2d(w_fp, HP, P3, bf),
        "p_b1": _pad2d(b1_fold[None, :], 1, P3, f32),
        "p_w2": _pad2d(p["p_w2"], P3, HP, bf),
        "p_b2": _pad2d(p["p_b2"][None, :], 1, HP, f32),
        "p_w3": _pad2d(p["p_w3"], HP, HP, bf),
        "p_b3": _pad2d(p["p_b3"][None, :], 1, HP, f32),
        # output head (o_w1 split into W_h and w_val)
        "o_wh": _pad2d(p["o_w1"][:H], HP, HP, bf),
        "o_wv": _pad2d(p["o_w1"][H:H + 1], 1, HP, f32),
        "o_b1": _pad2d(p["o_b1"][None, :], 1, HP, f32),
        "o_w2": _pad2d(p["o_w2"], HP, VP, bf),
        "o_b2": _pad2d(p["o_b2"][None, :], 1, VP, f32),
    }


def build_size_tables(size_dict, num_sizes=26):
    """size_dict -> padded (num_sizes, max_len) index table + validity mask."""
    max_len = max(len(v) for v in size_dict.values())
    idx = np.zeros((num_sizes, max_len), np.int32)
    valid = np.zeros((num_sizes, max_len), bool)
    for s, lst in size_dict.items():
        idx[s, :len(lst)] = lst
        valid[s, :len(lst)] = True
    return jnp.asarray(idx), jnp.asarray(valid)


# --------------------------- Forward pass (jit-able) --------------------------

def node2vec_forward(pp, batch, idx_table, valid_mask):
    f = batch["feature"]                 # (bs, n, F) f32
    v = batch["vocab"]                   # (bs, n)    i32
    size = batch["size"]                 # (bs, n)    i32
    x = batch["pos"]                     # (bs, n, 3) f32
    mask = batch["mask"]                 # (bs, n, 1) f32
    label = batch["label"]               # (bs,)      i32
    predict_idx = batch["predict_idx"]   # (bs,)      i32
    val = batch["val"]                   # (bs,)      f32

    bs, n_nodes, F = f.shape
    N = bs * n_nodes
    FP = pp["f_w1"].shape[0]
    P3 = pp["p_b1"].shape[1]
    HP = pp["p_w3"].shape[0]

    tm = _pick_row_tile(N)               # static row tile (16-aligned)
    NP = _round_up(N, tm)

    # --- embedding gathers (pre-multiplied by p_w1 slices; bf16) -------------
    #   vs = v_embedding @ p_w1[:H] + size_embedding @ p_w1[2H:3H]
    vs = (jnp.take(pp["v_table_p"], v.reshape(N), axis=0)
          + jnp.take(pp["size_table_p"], size.reshape(N), axis=0))   # (N, P3) bf16

    # --- pad rows/lanes, cast matmul operands to bf16 ------------------------
    f2d = jnp.pad(f.reshape(N, F), ((0, NP - N), (0, FP - F))).astype(jnp.bfloat16)
    vs2d = jnp.pad(vs, ((0, NP - N), (0, 0)))
    m2d = jnp.pad(mask.reshape(N, 1), ((0, NP - N), (0, 0)))

    # --- fused f_embedding MLP + projection MLP + mask (one Pallas kernel) ---
    h = run_embed_projection(f2d, vs2d, m2d, pp, tm)          # (NP, HP) bf16

    # --- message passing ------------------------------------------------------
    # TODO(synk): E_GCL layers unavailable (external module) -> identity on (h, x).
    _ = x.reshape(N, -1)

    # --- gather node to predict, fused output head ---------------------------
    flat_idx = jnp.arange(bs, dtype=jnp.int32) * n_nodes + predict_idx
    h_pred = h[flat_idx]                                       # (bs, HP) bf16
    BSP = _round_up(bs, ROW_ALIGN)
    h_pred_p = jnp.pad(h_pred, ((0, BSP - bs), (0, 0)))
    val_p = jnp.pad(val[:, None], ((0, BSP - bs), (0, 0)))
    logits = run_output_head(h_pred_p, val_p, pp)[:bs]         # (bs, VP) f32

    # --- size_dict-restricted cross-entropy + accuracy (vectorized) ----------
    size_at_pred = jnp.take_along_axis(size, predict_idx[:, None], axis=1)[:, 0]
    rows = idx_table[size_at_pred]                             # (bs, L)
    valid = valid_mask[size_at_pred]                           # (bs, L)
    sub = jnp.take_along_axis(logits, rows, axis=1)            # (bs, L)
    sub = jnp.where(valid, sub, -1e30)
    logp = jax.nn.log_softmax(sub, axis=1)
    # TODO(synk): if the label is absent from size_dict[size], the original
    #             PyTorch .index() raises; here argmax falls back to position 0.
    target_pos = jnp.argmax((rows == label[:, None]) & valid, axis=1)
    # sum of per-sample NLL == sum of per-sample CrossEntropyLoss in the reference
    loss = -jnp.sum(jnp.take_along_axis(logp, target_pos[:, None], axis=1))
    accuracy = jnp.mean((jnp.argmax(sub, axis=1) == target_pos).astype(jnp.float32))
    return {"loss": loss, "accuracy": accuracy}


node2vec_forward_jit = jax.jit(node2vec_forward)


# --------------------------- Driver ------------------------------------------

if __name__ == "__main__":
    bs, n_nodes = 2, 8
    feature_size, hidden_size, vocab_size = 16, 32, 24

    key = jax.random.PRNGKey(0)
    pkey, k_f, k_v, k_s, k_x, k_m, k_val, k_pi = jax.random.split(key, 8)

    params = init_params(pkey, vocab_size, feature_size, hidden_size)
    padded = prepare_padded_params(params, feature_size, hidden_size, vocab_size)

    # Synthetic deterministic size_dict: size value -> sorted list of vocab indices.
    size_dict = {s: sorted({(s * 5 + 3 * j) % vocab_size for j in range(6)})
                 for s in range(26)}
    idx_table, valid_mask = build_size_tables(size_dict)

    f = jax.random.normal(k_f, (bs, n_nodes, feature_size), dtype=jnp.float32)
    v = jax.random.randint(k_v, (bs, n_nodes), 0, vocab_size + 1, dtype=jnp.int32)
    size = jax.random.randint(k_s, (bs, n_nodes), 0, 26, dtype=jnp.int32)
    pos = jax.random.normal(k_x, (bs, n_nodes, 3), dtype=jnp.float32)
    mask = (jax.random.uniform(k_m, (bs, n_nodes, 1)) > 0.2).astype(jnp.float32)
    val = jax.random.uniform(k_val, (bs,), dtype=jnp.float32)
    predict_idx = jax.random.randint(k_pi, (bs,), 0, n_nodes, dtype=jnp.int32)

    # Labels guaranteed to lie inside size_dict[size_at_predict_idx] (host-side).
    size_np = np.asarray(size)
    pi_np = np.asarray(predict_idx)
    label = jnp.asarray(
        [size_dict[int(size_np[i, pi_np[i]])][i % len(size_dict[int(size_np[i, pi_np[i]])])]
         for i in range(bs)],
        dtype=jnp.int32,
    )

    batch = {
        "feature": f, "vocab": v, "size": size, "pos": pos,
        "edges": None,  # consumed only by E_GCL message passing (see TODO above)
        "mask": mask, "label": label, "predict_idx": predict_idx, "val": val,
    }

    out = node2vec_forward_jit(padded, batch, idx_table, valid_mask)
    jax.block_until_ready(out["loss"])
    jax.block_until_ready(out["accuracy"])
    print("KERNEL_OK")
</pallas_src>

<mosaic_0001>
module attributes {stable_mosaic.version = 11 : i64} {
  func.func @fused_embed_proj_kernel(%arg0: i32, %arg1: memref<16x128xbf16, #tpu.memory_space<vmem>>, %arg2: memref<16x128xbf16, #tpu.memory_space<vmem>>, %arg3: memref<16x1xf32, #tpu.memory_space<vmem>>, %arg4: memref<128x128xbf16, #tpu.memory_space<vmem>>, %arg5: memref<1x128xf32, #tpu.memory_space<vmem>>, %arg6: memref<128x128xbf16, #tpu.memory_space<vmem>>, %arg7: memref<1x128xf32, #tpu.memory_space<vmem>>, %arg8: memref<128x128xbf16, #tpu.memory_space<vmem>>, %arg9: memref<1x128xf32, #tpu.memory_space<vmem>>, %arg10: memref<128x128xbf16, #tpu.memory_space<vmem>>, %arg11: memref<1x128xf32, #tpu.memory_space<vmem>>, %arg12: memref<16x128xbf16, #tpu.memory_space<vmem>>) attributes {dimension_semantics = [#tpu.dimension_semantics<parallel>], iteration_bounds = array<i64: 1>, scalar_prefetch = 0 : i64, scratch_operands = 0 : i64, tpu.core_type = #tpu.core_type<tc>, window_params = [{transform_indices = @transform_0, window_bounds = array<i64: 16, 128>}, {transform_indices = @transform_1, window_bounds = array<i64: 16, 128>}, {transform_indices = @transform_2, window_bounds = array<i64: 16, 1>}, {pipeline_mode = #tpu.pipeline_mode<synchronous>, transform_indices = @transform_3, window_bounds = array<i64: 128, 128>}, {pipeline_mode = #tpu.pipeline_mode<synchronous>, transform_indices = @transform_4, window_bounds = array<i64: 1, 128>}, {pipeline_mode = #tpu.pipeline_mode<synchronous>, transform_indices = @transform_5, window_bounds = array<i64: 128, 128>}, {pipeline_mode = #tpu.pipeline_mode<synchronous>, transform_indices = @transform_6, window_bounds = array<i64: 1, 128>}, {pipeline_mode = #tpu.pipeline_mode<synchronous>, transform_indices = @transform_7, window_bounds = array<i64: 128, 128>}, {pipeline_mode = #tpu.pipeline_mode<synchronous>, transform_indices = @transform_8, window_bounds = array<i64: 1, 128>}, {pipeline_mode = #tpu.pipeline_mode<synchronous>, transform_indices = @transform_9, window_bounds = array<i64: 128, 128>}, {pipeline_mode = #tpu.pipeline_mode<synchronous>, transform_indices = @transform_10, window_bounds = array<i64: 1, 128>}, {transform_indices = @transform_11, window_bounds = array<i64: 16, 128>}]} {
    %c0 = arith.constant 0 : index
    %c0_0 = arith.constant 0 : index
    %0 = vector.load %arg1[%c0, %c0_0] : memref<16x128xbf16, #tpu.memory_space<vmem>>, vector<16x128xbf16>
    %c0_1 = arith.constant 0 : index
    %c0_2 = arith.constant 0 : index
    %1 = vector.load %arg4[%c0_1, %c0_2] : memref<128x128xbf16, #tpu.memory_space<vmem>>, vector<128x128xbf16>
    %cst = arith.constant dense<0.000000e+00> : vector<16x128xf32>
    %2 = tpu.matmul %0, %1, %cst {dimension_numbers = #tpu.dot_dimension_numbers<[1], [0], [0], [1], [0, 0, 1, 1], [], []>} : vector<16x128xbf16>, vector<128x128xbf16>, vector<16x128xf32> -> vector<16x128xf32>
    %c0_3 = arith.constant 0 : index
    %c0_4 = arith.constant 0 : index
    %3 = vector.load %arg5[%c0_3, %c0_4] : memref<1x128xf32, #tpu.memory_space<vmem>>, vector<1x128xf32>
    %4 = vector.broadcast %3 : vector<1x128xf32> to vector<16x128xf32>
    %5 = arith.addf %2, %4 : vector<16x128xf32>
    %6 = arith.negf %5 : vector<16x128xf32>
    %7 = math.exp %6 : vector<16x128xf32>
    %cst_5 = arith.constant 1.000000e+00 : f32
    %8 = vector.broadcast %cst_5 : f32 to vector<16x128xf32>
    %9 = arith.addf %8, %7 : vector<16x128xf32>
    %10 = arith.divf %8, %9 : vector<16x128xf32>
    %11 = arith.mulf %5, %10 : vector<16x128xf32>
    %12 = arith.truncf %11 : vector<16x128xf32> to vector<16x128xbf16>
    %c0_6 = arith.constant 0 : index
    %c0_7 = arith.constant 0 : index
    %13 = vector.load %arg6[%c0_6, %c0_7] : memref<128x128xbf16, #tpu.memory_space<vmem>>, vector<128x128xbf16>
    %cst_8 = arith.constant dense<0.000000e+00> : vector<16x128xf32>
    %14 = tpu.matmul %12, %13, %cst_8 {dimension_numbers = #tpu.dot_dimension_numbers<[1], [0], [0], [1], [0, 0, 1, 1], [], []>} : vector<16x128xbf16>, vector<128x128xbf16>, vector<16x128xf32> -> vector<16x128xf32>
    %c0_9 = arith.constant 0 : index
    %c0_10 = arith.constant 0 : index
    %15 = vector.load %arg2[%c0_9, %c0_10] : memref<16x128xbf16, #tpu.memory_space<vmem>>, vector<16x128xbf16>
    %16 = arith.extf %15 : vector<16x128xbf16> to vector<16x128xf32>
    %17 = arith.addf %14, %16 : vector<16x128xf32>
    %c0_11 = arith.constant 0 : index
    %c0_12 = arith.constant 0 : index
    %18 = vector.load %arg7[%c0_11, %c0_12] : memref<1x128xf32, #tpu.memory_space<vmem>>, vector<1x128xf32>
    %19 = vector.broadcast %18 : vector<1x128xf32> to vector<16x128xf32>
    %20 = arith.addf %17, %19 : vector<16x128xf32>
    %21 = arith.negf %20 : vector<16x128xf32>
    %22 = math.exp %21 : vector<16x128xf32>
    %cst_13 = arith.constant 1.000000e+00 : f32
    %23 = vector.broadcast %cst_13 : f32 to vector<16x128xf32>
    %24 = arith.addf %23, %22 : vector<16x128xf32>
    %25 = arith.divf %23, %24 : vector<16x128xf32>
    %26 = arith.mulf %20, %25 : vector<16x128xf32>
    %27 = arith.truncf %26 : vector<16x128xf32> to vector<16x128xbf16>
    %c0_14 = arith.constant 0 : index
    %c0_15 = arith.constant 0 : index
    %28 = vector.load %arg8[%c0_14, %c0_15] : memref<128x128xbf16, #tpu.memory_space<vmem>>, vector<128x128xbf16>
    %cst_16 = arith.constant dense<0.000000e+00> : vector<16x128xf32>
    %29 = tpu.matmul %27, %28, %cst_16 {dimension_numbers = #tpu.dot_dimension_numbers<[1], [0], [0], [1], [0, 0, 1, 1], [], []>} : vector<16x128xbf16>, vector<128x128xbf16>, vector<16x128xf32> -> vector<16x128xf32>
    %c0_17 = arith.constant 0 : index
    %c0_18 = arith.constant 0 : index
    %30 = vector.load %arg9[%c0_17, %c0_18] : memref<1x128xf32, #tpu.memory_space<vmem>>, vector<1x128xf32>
    %31 = vector.broadcast %30 : vector<1x128xf32> to vector<16x128xf32>
    %32 = arith.addf %29, %31 : vector<16x128xf32>
    %33 = arith.negf %32 : vector<16x128xf32>
    %34 = math.exp %33 : vector<16x128xf32>
    %cst_19 = arith.constant 1.000000e+00 : f32
    %35 = vector.broadcast %cst_19 : f32 to vector<16x128xf32>
    %36 = arith.addf %35, %34 : vector<16x128xf32>
    %37 = arith.divf %35, %36 : vector<16x128xf32>
    %38 = arith.mulf %32, %37 : vector<16x128xf32>
    %39 = arith.truncf %38 : vector<16x128xf32> to vector<16x128xbf16>
    %c0_20 = arith.constant 0 : index
    %c0_21 = arith.constant 0 : index
    %40 = vector.load %arg10[%c0_20, %c0_21] : memref<128x128xbf16, #tpu.memory_space<vmem>>, vector<128x128xbf16>
    %cst_22 = arith.constant dense<0.000000e+00> : vector<16x128xf32>
    %41 = tpu.matmul %39, %40, %cst_22 {dimension_numbers = #tpu.dot_dimension_numbers<[1], [0], [0], [1], [0, 0, 1, 1], [], []>} : vector<16x128xbf16>, vector<128x128xbf16>, vector<16x128xf32> -> vector<16x128xf32>
    %c0_23 = arith.constant 0 : index
    %c0_24 = arith.constant 0 : index
    %42 = vector.load %arg11[%c0_23, %c0_24] : memref<1x128xf32, #tpu.memory_space<vmem>>, vector<1x128xf32>
    %43 = vector.broadcast %42 : vector<1x128xf32> to vector<16x128xf32>
    %44 = arith.addf %41, %43 : vector<16x128xf32>
    %c0_25 = arith.constant 0 : index
    %c0_26 = arith.constant 0 : index
    %45 = vector.load %arg3[%c0_25, %c0_26] : memref<16x1xf32, #tpu.memory_space<vmem>>, vector<16x1xf32>
    %46 = vector.broadcast %45 : vector<16x1xf32> to vector<16x128xf32>
    %47 = arith.mulf %44, %46 : vector<16x128xf32>
    %48 = arith.truncf %47 : vector<16x128xf32> to vector<16x128xbf16>
    %c0_27 = arith.constant 0 : index
    %c0_28 = arith.constant 0 : index
    %49 = vector.load %arg12[%c0_27, %c0_28] : memref<16x128xbf16, #tpu.memory_space<vmem>>, vector<16x128xbf16>
    tpu.vector_store %arg12[%c0_27, %c0_28], %48 {strides = array<i32>} : memref<16x128xbf16, #tpu.memory_space<vmem>>, vector<16x128xbf16>,
    return
  }
  func.func @transform_0(%arg0: i32) -> (i32, i32) {
    %c0_i32 = arith.constant 0 : i32
    %c0_i32_0 = arith.constant 0 : i32
    return %arg0, %c0_i32 : i32, i32
  }
  func.func @transform_1(%arg0: i32) -> (i32, i32) {
    %c0_i32 = arith.constant 0 : i32
    %c0_i32_0 = arith.constant 0 : i32
    return %arg0, %c0_i32 : i32, i32
  }
  func.func @transform_2(%arg0: i32) -> (i32, i32) {
    %c0_i32 = arith.constant 0 : i32
    %c0_i32_0 = arith.constant 0 : i32
    return %arg0, %c0_i32 : i32, i32
  }
  func.func @transform_3(%arg0: i32) -> (i32, i32) {
    %c0_i32 = arith.constant 0 : i32
    %c0_i32_0 = arith.constant 0 : i32
    %c0_i32_1 = arith.constant 0 : i32
    return %c0_i32, %c0_i32_0 : i32, i32
  }
  func.func @transform_4(%arg0: i32) -> (i32, i32) {
    %c0_i32 = arith.constant 0 : i32
    %c0_i32_0 = arith.constant 0 : i32
    %c0_i32_1 = arith.constant 0 : i32
    return %c0_i32, %c0_i32_0 : i32, i32
  }
  func.func @transform_5(%arg0: i32) -> (i32, i32) {
    %c0_i32 = arith.constant 0 : i32
    %c0_i32_0 = arith.constant 0 : i32
    %c0_i32_1 = arith.constant 0 : i32
    return %c0_i32, %c0_i32_0 : i32, i32
  }
  func.func @transform_6(%arg0: i32) -> (i32, i32) {
    %c0_i32 = arith.constant 0 : i32
    %c0_i32_0 = arith.constant 0 : i32
    %c0_i32_1 = arith.constant 0 : i32
    return %c0_i32, %c0_i32_0 : i32, i32
  }
  func.func @transform_7(%arg0: i32) -> (i32, i32) {
    %c0_i32 = arith.constant 0 : i32
    %c0_i32_0 = arith.constant 0 : i32
    %c0_i32_1 = arith.constant 0 : i32
    return %c0_i32, %c0_i32_0 : i32, i32
  }
  func.func @transform_8(%arg0: i32) -> (i32, i32) {
    %c0_i32 = arith.constant 0 : i32
    %c0_i32_0 = arith.constant 0 : i32
    %c0_i32_1 = arith.constant 0 : i32
    return %c0_i32, %c0_i32_0 : i32, i32
  }
  func.func @transform_9(%arg0: i32) -> (i32, i32) {
    %c0_i32 = arith.constant 0 : i32
    %c0_i32_0 = arith.constant 0 : i32
    %c0_i32_1 = arith.constant 0 : i32
    return %c0_i32, %c0_i32_0 : i32, i32
  }
  func.func @transform_10(%arg0: i32) -> (i32, i32) {
    %c0_i32 = arith.constant 0 : i32
    %c0_i32_0 = arith.constant 0 : i32
    %c0_i32_1 = arith.constant 0 : i32
    return %c0_i32, %c0_i32_0 : i32, i32
  }
  func.func @transform_11(%arg0: i32) -> (i32, i32) {
    %c0_i32 = arith.constant 0 : i32
    %c0_i32_0 = arith.constant 0 : i32
    return %arg0, %c0_i32 : i32, i32
  }
}

module attributes {stable_mosaic.version = 11 : i64} {
  func.func @output_head_kernel(%arg0: memref<16x128xbf16, #tpu.memory_space<vmem>>, %arg1: memref<16x1xf32, #tpu.memory_space<vmem>>, %arg2: memref<128x128xbf16, #tpu.memory_space<vmem>>, %arg3: memref<1x128xf32, #tpu.memory_space<vmem>>, %arg4: memref<1x128xf32, #tpu.memory_space<vmem>>, %arg5: memref<128x128xbf16, #tpu.memory_space<vmem>>, %arg6: memref<1x128xf32, #tpu.memory_space<vmem>>, %arg7: memref<16x128xf32, #tpu.memory_space<vmem>>) attributes {dimension_semantics = [], scalar_prefetch = 0 : i64, scratch_operands = 0 : i64, tpu.core_type = #tpu.core_type<tc>} {
    %c0 = arith.constant 0 : index
    %c0_0 = arith.constant 0 : index
    %0 = vector.load %arg0[%c0, %c0_0] : memref<16x128xbf16, #tpu.memory_space<vmem>>, vector<16x128xbf16>
    %c0_1 = arith.constant 0 : index
    %c0_2 = arith.constant 0 : index
    %1 = vector.load %arg2[%c0_1, %c0_2] : memref<128x128xbf16, #tpu.memory_space<vmem>>, vector<128x128xbf16>
    %cst = arith.constant dense<0.000000e+00> : vector<16x128xf32>
    %2 = tpu.matmul %0, %1, %cst {dimension_numbers = #tpu.dot_dimension_numbers<[1], [0], [0], [1], [0, 0, 1, 1], [], []>} : vector<16x128xbf16>, vector<128x128xbf16>, vector<16x128xf32> -> vector<16x128xf32>
    %c0_3 = arith.constant 0 : index
    %c0_4 = arith.constant 0 : index
    %3 = vector.load %arg1[%c0_3, %c0_4] : memref<16x1xf32, #tpu.memory_space<vmem>>, vector<16x1xf32>
    %c0_5 = arith.constant 0 : index
    %c0_6 = arith.constant 0 : index
    %4 = vector.load %arg3[%c0_5, %c0_6] : memref<1x128xf32, #tpu.memory_space<vmem>>, vector<1x128xf32>
    %5 = vector.broadcast %3 : vector<16x1xf32> to vector<16x128xf32>
    %6 = vector.broadcast %4 : vector<1x128xf32> to vector<16x128xf32>
    %7 = arith.mulf %5, %6 : vector<16x128xf32>
    %8 = arith.addf %2, %7 : vector<16x128xf32>
    %c0_7 = arith.constant 0 : index
    %c0_8 = arith.constant 0 : index
    %9 = vector.load %arg4[%c0_7, %c0_8] : memref<1x128xf32, #tpu.memory_space<vmem>>, vector<1x128xf32>
    %10 = vector.broadcast %9 : vector<1x128xf32> to vector<16x128xf32>
    %11 = arith.addf %8, %10 : vector<16x128xf32>
    %12 = arith.negf %11 : vector<16x128xf32>
    %13 = math.exp %12 : vector<16x128xf32>
    %cst_9 = arith.constant 1.000000e+00 : f32
    %14 = vector.broadcast %cst_9 : f32 to vector<16x128xf32>
    %15 = arith.addf %14, %13 : vector<16x128xf32>
    %16 = arith.divf %14, %15 : vector<16x128xf32>
    %17 = arith.mulf %11, %16 : vector<16x128xf32>
    %18 = arith.truncf %17 : vector<16x128xf32> to vector<16x128xbf16>
    %c0_10 = arith.constant 0 : index
    %c0_11 = arith.constant 0 : index
    %19 = vector.load %arg5[%c0_10, %c0_11] : memref<128x128xbf16, #tpu.memory_space<vmem>>, vector<128x128xbf16>
    %cst_12 = arith.constant dense<0.000000e+00> : vector<16x128xf32>
    %20 = tpu.matmul %18, %19, %cst_12 {dimension_numbers = #tpu.dot_dimension_numbers<[1], [0], [0], [1], [0, 0, 1, 1], [], []>} : vector<16x128xbf16>, vector<128x128xbf16>, vector<16x128xf32> -> vector<16x128xf32>
    %c0_13 = arith.constant 0 : index
    %c0_14 = arith.constant 0 : index
    %21 = vector.load %arg6[%c0_13, %c0_14] : memref<1x128xf32, #tpu.memory_space<vmem>>, vector<1x128xf32>
    %22 = vector.broadcast %21 : vector<1x128xf32> to vector<16x128xf32>
    %23 = arith.addf %20, %22 : vector<16x128xf32>
    %c0_15 = arith.constant 0 : index
    %c0_16 = arith.constant 0 : index
    %24 = vector.load %arg7[%c0_15, %c0_16] : memref<16x128xf32, #tpu.memory_space<vmem>>, vector<16x128xf32>
    tpu.vector_store %arg7[%c0_15, %c0_16], %23 {strides = array<i32>} : memref<16x128xf32, #tpu.memory_space<vmem>>, vector<16x128xf32>,
    return
  }
}

</mosaic_0001>

<llo_original>
// kernel: node2vec_forward.3
$region0: #{node2vec_forward.3}
  #allocation0 [shape = 'u32[]', space=smem, size = 0x4, offset = 0x4, fixed_abs, tag = 'smem constant byte address 0x4 - core index']
  #allocation1 [shape = 'u32[144,128]{1,0:T(1,128)}', space=vmem, size = 0x12000, scoped, tag = 'internal scratch']
  %s0 = inlined_call_operand.vmem [shape: bf16[16,128], index: 0, kind: input, shape index: {}]
  %s1 = inlined_call_operand.vmem [shape: f32[16,1], index: 1, kind: input, shape index: {}]
  %s2 = inlined_call_operand.vmem [shape: bf16[128,128], index: 2, kind: input, shape index: {}]
  %s3 = inlined_call_operand.vmem [shape: f32[1,128], index: 3, kind: input, shape index: {}]
  %s4 = inlined_call_operand.vmem [shape: f32[1,128], index: 4, kind: input, shape index: {}]
  %s5 = inlined_call_operand.vmem [shape: bf16[128,128], index: 5, kind: input, shape index: {}]
  %s6 = inlined_call_operand.vmem [shape: f32[1,128], index: 6, kind: input, shape index: {}]
  %s7 = inlined_call_operand.vmem [shape: f32[16,128], index: 7, kind: output, shape index: {}]
  %s8 = sld [smem:[#allocation0]]
  $region38: #{node2vec_forward.3} parent=0
    _
  %s10 = ssub.s32 1, %s8
  %s11 = scalar_select 0, %s10, %s8
  // Predicated region
  $region2: #{node2vec_forward.3} parent=0 // pred_check
    _
  $region3: #{node2vec_forward.3} parent=0 // pred_check_branch
    %13 = sbr.rel (0) target = $region5
  $region4: #{node2vec_forward.3} parent=0 // pred_region
    _
  $region5: #{node2vec_forward.3} parent=0 // pred_fallthru
    _
  // Predicated region
  $region6: #{node2vec_forward.3} parent=0 // pred_check
    _
  $region7: #{node2vec_forward.3} parent=0 // pred_check_branch
    %15 = sbr.rel (0) target = $region9
  $region8: #{node2vec_forward.3} parent=0 // pred_region
    _
  $region9: #{node2vec_forward.3} parent=0 // pred_fallthru
    _
  // Predicated region
  $region10: #{node2vec_forward.3} parent=0 // pred_check
    _
  $region11: #{node2vec_forward.3} parent=0 // pred_check_branch
    %17 = sbr.rel (0) target = $region13
  $region12: #{node2vec_forward.3} parent=0 // pred_region
    _
  $region13: #{node2vec_forward.3} parent=0 // pred_fallthru
    _
  // Predicated region
  $region14: #{node2vec_forward.3} parent=0 // pred_check
    _
  $region15: #{node2vec_forward.3} parent=0 // pred_check_branch
    %19 = sbr.rel (0) target = $region17
  $region16: #{node2vec_forward.3} parent=0 // pred_region
    _
  $region17: #{node2vec_forward.3} parent=0 // pred_fallthru
    _
  // Predicated region
  $region18: #{node2vec_forward.3} parent=0 // pred_check
    _
  $region19: #{node2vec_forward.3} parent=0 // pred_check_branch
    %21 = sbr.rel (0) target = $region21
  $region20: #{node2vec_forward.3} parent=0 // pred_region
    _
  $region21: #{node2vec_forward.3} parent=0 // pred_fallthru
    _
  // Predicated region
  $region22: #{node2vec_forward.3} parent=0 // pred_check
    _
  $region23: #{node2vec_forward.3} parent=0 // pred_check_branch
    %23 = sbr.rel (0) target = $region25
  $region24: #{node2vec_forward.3} parent=0 // pred_region
    _
  $region25: #{node2vec_forward.3} parent=0 // pred_fallthru
    _
  // Predicated region
  $region26: #{node2vec_forward.3} parent=0 // pred_check
    _
  $region27: #{node2vec_forward.3} parent=0 // pred_check_branch
    %25 = sbr.rel (0) target = $region29
  $region28: #{node2vec_forward.3} parent=0 // pred_region
    _
  $region29: #{node2vec_forward.3} parent=0 // pred_fallthru
    _
  %v27 = vld [vmem:[%s0] sm:$0xf]
  %v28 = vld [vmem:[%s0 + $0x4] sm:$0xf]
  %v29 = vld [vmem:[%s2] sm:$0xf]
  %v30 = vld [vmem:[%s2 + $0x4] sm:$0xf]
  %v31 = vld [vmem:[%s2 + $0x8] sm:$0xf]
  %v32 = vld [vmem:[%s2 + $0xc] sm:$0xf]
  %v33 = vld [vmem:[%s2 + $0x10] sm:$0xf]
  %v34 = vld [vmem:[%s2 + $0x14] sm:$0xf]
  %v35 = vld [vmem:[%s2 + $0x18] sm:$0xf]
  %v36 = vld [vmem:[%s2 + $0x1c] sm:$0xf]
  %v37 = vld [vmem:[%s2 + $0x20] sm:$0xf]
  %v38 = vld [vmem:[%s2 + $0x24] sm:$0xf]
  %v39 = vld [vmem:[%s2 + $0x28] sm:$0xf]
  %v40 = vld [vmem:[%s2 + $0x2c] sm:$0xf]
  %v41 = vld [vmem:[%s2 + $0x30] sm:$0xf]
  %v42 = vld [vmem:[%s2 + $0x34] sm:$0xf]
  %v43 = vld [vmem:[%s2 + $0x38] sm:$0xf]
  %v44 = vld [vmem:[%s2 + $0x3c] sm:$0xf]
  %v45 = vld [vmem:[%s1] sm:$0xff]
  %v46 = vld [vmem:[%s1 + $0x8] sm:$0xff]
  %v47 = vld [vmem:[%s3] sm:$0x1]
  %49 = vset.pattern.permute.xlu0 0
  %50 = vperm.xlu0 %49, %v45
  %v51 = vpop.permute.xlu0 %50
  %54 = vset.pattern.permute.xlu0 0
  %55 = vperm.xlu0 %54, %v46
  %v56 = vpop.permute.xlu0 %55
  %v59 = vlaneseq
  %v60 = vshrl.u32 %v59, 7
  %v61 = vsub.s32 0, %v60
  %v62 = vrot.slane %v47, %v61
  %v64 = vmul.f32 %v51, %v62
  %v65 = vmul.f32 %v56, %v62
  %v68 = vunpack.c.l.b16 %v27
  %v69 = vunpack.c.l.b16 %v28
  %v70 = vpack.c.b16 %v69, %v68
  %v88 = vunpack.c.l.b16 %v29
  %v89 = vunpack.c.l.b16 %v30
  %v90 = vunpack.c.l.b16 %v31
  %v91 = vunpack.c.l.b16 %v32
  %v92 = vunpack.c.l.b16 %v33
  %v93 = vunpack.c.l.b16 %v34
  %v94 = vunpack.c.l.b16 %v35
  %v95 = vunpack.c.l.b16 %v36
  %v96 = vunpack.c.l.b16 %v37
  %v97 = vunpack.c.l.b16 %v38
  %v98 = vunpack.c.l.b16 %v39
  %v99 = vunpack.c.l.b16 %v40
  %v100 = vunpack.c.l.b16 %v41
  %v101 = vunpack.c.l.b16 %v42
  %v102 = vunpack.c.l.b16 %v43
  %v103 = vunpack.c.l.b16 %v44
  %v104 = vpack.c.b16 %v89, %v88
  %v105 = vpack.c.b16 %v91, %v90
  %v106 = vpack.c.b16 %v93, %v92
  %v107 = vpack.c.b16 %v95, %v94
  %v108 = vpack.c.b16 %v97, %v96
  %v109 = vpack.c.b16 %v99, %v98
  %v110 = vpack.c.b16 %v101, %v100
  %v111 = vpack.c.b16 %v103, %v102
  %120 = vmatprep.subr.bf16.mxu0 0
  %121 = vmatpush1.bf16.msra.mxu0 %v111
  %122 = vmatprep.subr.bf16.mxu0 0
  %123 = vmatpush1.bf16.msra.mxu0 %v110
  %124 = vmatprep.subr.bf16.mxu0 0
  %125 = vmatpush1.bf16.msra.mxu0 %v109
  %126 = vmatprep.subr.bf16.mxu0 0
  %127 = vmatpush1.bf16.msra.mxu0 %v108
  %128 = vmatprep.subr.bf16.mxu0 0
  %129 = vmatpush1.bf16.msra.mxu0 %v107
  %130 = vmatprep.subr.bf16.mxu0 0
  %131 = vmatpush1.bf16.msra.mxu0 %v106
  %132 = vmatprep.subr.bf16.mxu0 0
  %133 = vmatpush1.bf16.msra.mxu0 %v105
  %134 = vmatprep.subr.bf16.mxu0 0
  %135 = vmatpush1.bf16.msra.mxu0 %v104
  %136 = vmatprep.subr.bf16.mxu0 0
  %137 = vmatpush2.bf16.msra.mxu0 0
  %138 = vmatprep.subr.bf16.mxu0 0
  %139 = vmatpush2.bf16.msra.mxu0 0
  %140 = vmatprep.subr.bf16.mxu0 0
  %141 = vmatpush2.bf16.msra.mxu0 0
  %142 = vmatprep.subr.bf16.mxu0 0
  %143 = vmatpush2.bf16.msra.mxu0 0
  %144 = vmatprep.subr.bf16.mxu0 0
  %145 = vmatpush2.bf16.msra.mxu0 0
  %146 = vmatprep.subr.bf16.mxu0 0
  %147 = vmatpush2.bf16.msra.mxu0 0
  %148 = vmatprep.subr.bf16.mxu0 0
  %149 = vmatpush2.bf16.msra.mxu0 0
  %150 = vmatprep.subr.bf16.mxu0 0
  %151 = vmatpush2.bf16.msra.mxu0 0
  %152 = vmatprep.mubr.bf16.mxu0 0
  %153 = vmatmul.mubr.bf16.gmra.mxu0 %v70
  %v154 = vpop.f32.mrf.mxu0
  %v155 = vadd.f32 %v64, %v154
  %v156 = vpop.f32.mrf.mxu0
  %v157 = vpop.f32.mrf.mxu0
  %v158 = vadd.f32 %v65, %v157
  %v159 = vpop.f32.mrf.mxu0
  %160 = vdwg.mxu0
  %v161 = vld [vmem:[%s4] sm:$0x1]
  %v163 = vlaneseq
  %v164 = vshrl.u32 %v163, 7
  %v165 = vsub.s32 0, %v164
  %v166 = vrot.slane %v161, %v165
  %v168 = vadd.f32 %v155, %v166
  %v169 = vadd.f32 %v158, %v166
  %v170 = vxor.u32 %v168, 2147483648
  %v171 = vxor.u32 %v169, 2147483648
  %v172 = vmul.f32 %v170, 1.442695
  %v173 = vpow.pop %v172
  %v174 = vmul.f32 %v171, 1.442695
  %v175 = vpow.pop %v174
  %v176 = vadd.f32 %v173, 1.0
  %v177 = vadd.f32 %v175, 1.0
  %v178 = vrcp.pop %v176
  %v179 = vmul.f32 1.0, %v178
  %v180 = vrcp.pop %v177
  %v181 = vmul.f32 1.0, %v180
  %v182 = vmul.f32 %v168, %v179
  %v183 = vmul.f32 %v169, %v181
  %v184 = vpack.c.bf16 %v183, %v182
  %v185 = vld [vmem:[%s5] sm:$0xf]
  %v186 = vld [vmem:[%s5 + $0x4] sm:$0xf]
  %v187 = vld [vmem:[%s5 + $0x8] sm:$0xf]
  %v188 = vld [vmem:[%s5 + $0xc] sm:$0xf]
  %v189 = vld [vmem:[%s5 + $0x10] sm:$0xf]
  %v190 = vld [vmem:[%s5 + $0x14] sm:$0xf]
  %v191 = vld [vmem:[%s5 + $0x18] sm:$0xf]
  %v192 = vld [vmem:[%s5 + $0x1c] sm:$0xf]
  %v193 = vld [vmem:[%s5 + $0x20] sm:$0xf]
  %v194 = vld [vmem:[%s5 + $0x24] sm:$0xf]
  %v195 = vld [vmem:[%s5 + $0x28] sm:$0xf]
  %v196 = vld [vmem:[%s5 + $0x2c] sm:$0xf]
  %v197 = vld [vmem:[%s5 + $0x30] sm:$0xf]
  %v198 = vld [vmem:[%s5 + $0x34] sm:$0xf]
  %v199 = vld [vmem:[%s5 + $0x38] sm:$0xf]
  %v200 = vld [vmem:[%s5 + $0x3c] sm:$0xf]
  %v201 = vld [vmem:[%s6] sm:$0x1]
  %v203 = vlaneseq
  %v204 = vshrl.u32 %v203, 7
  %v205 = vsub.s32 0, %v204
  %v206 = vrot.slane %v201, %v205
  %v224 = vunpack.c.l.b16 %v185
  %v225 = vunpack.c.l.b16 %v186
  %v226 = vunpack.c.l.b16 %v187
  %v227 = vunpack.c.l.b16 %v188
  %v228 = vunpack.c.l.b16 %v189
  %v229 = vunpack.c.l.b16 %v190
  %v230 = vunpack.c.l.b16 %v191
  %v231 = vunpack.c.l.b16 %v192
  %v232 = vunpack.c.l.b16 %v193
  %v233 = vunpack.c.l.b16 %v194
  %v234 = vunpack.c.l.b16 %v195
  %v235 = vunpack.c.l.b16 %v196
  %v236 = vunpack.c.l.b16 %v197
  %v237 = vunpack.c.l.b16 %v198
  %v238 = vunpack.c.l.b16 %v199
  %v239 = vunpack.c.l.b16 %v200
  %v240 = vpack.c.b16 %v225, %v224
  %v241 = vpack.c.b16 %v227, %v226
  %v242 = vpack.c.b16 %v229, %v228
  %v243 = vpack.c.b16 %v231, %v230
  %v244 = vpack.c.b16 %v233, %v232
  %v245 = vpack.c.b16 %v235, %v234
  %v246 = vpack.c.b16 %v237, %v236
  %v247 = vpack.c.b16 %v239, %v238
  %256 = vmatprep.subr.bf16.mxu0 0
  %257 = vmatpush1.bf16.msra.mxu0 %v247
  %258 = vmatprep.subr.bf16.mxu0 0
  %259 = vmatpush1.bf16.msra.mxu0 %v246
  %260 = vmatprep.subr.bf16.mxu0 0
  %261 = vmatpush1.bf16.msra.mxu0 %v245
  %262 = vmatprep.subr.bf16.mxu0 0
  %263 = vmatpush1.bf16.msra.mxu0 %v244
  %264 = vmatprep.subr.bf16.mxu0 0
  %265 = vmatpush1.bf16.msra.mxu0 %v243
  %266 = vmatprep.subr.bf16.mxu0 0
  %267 = vmatpush1.bf16.msra.mxu0 %v242
  %268 = vmatprep.subr.bf16.mxu0 0
  %269 = vmatpush1.bf16.msra.mxu0 %v241
  %270 = vmatprep.subr.bf16.mxu0 0
  %271 = vmatpush1.bf16.msra.mxu0 %v240
  %272 = vmatprep.subr.bf16.mxu0 0
  %273 = vmatpush2.bf16.msra.mxu0 0
  %274 = vmatprep.subr.bf16.mxu0 0
  %275 = vmatpush2.bf16.msra.mxu0 0
  %276 = vmatprep.subr.bf16.mxu0 0
  %277 = vmatpush2.bf16.msra.mxu0 0
  %278 = vmatprep.subr.bf16.mxu0 0
  %279 = vmatpush2.bf16.msra.mxu0 0
  %280 = vmatprep.subr.bf16.mxu0 0
  %281 = vmatpush2.bf16.msra.mxu0 0
  %282 = vmatprep.subr.bf16.mxu0 0
  %283 = vmatpush2.bf16.msra.mxu0 0
  %284 = vmatprep.subr.bf16.mxu0 0
  %285 = vmatpush2.bf16.msra.mxu0 0
  %286 = vmatprep.subr.bf16.mxu0 0
  %287 = vmatpush2.bf16.msra.mxu0 0
  %288 = vmatprep.mubr.bf16.mxu0 0
  %289 = vmatmul.mubr.bf16.gmra.mxu0 %v184
  %v290 = vpop.f32.mrf.mxu0
  %v291 = vadd.f32 %v206, %v290
  %v292 = vpop.f32.mrf.mxu0
  %v293 = vpop.f32.mrf.mxu0
  %v294 = vadd.f32 %v206, %v293
  %v295 = vpop.f32.mrf.mxu0
  %296 = vdwg.mxu0
  %297 = vst [vmem:[%s7] sm:$0xff] %v291
  %298 = vst [vmem:[%s7 + $0x8] sm:$0xff] %v294
  // Predicated region
  $region30: #{node2vec_forward.3} parent=0 // pred_check
    _
  $region31: #{node2vec_forward.3} parent=0 // pred_check_branch
    %300 = sbr.rel (0) target = $region33
  $region32: #{node2vec_forward.3} parent=0 // pred_region
    _
  $region33: #{node2vec_forward.3} parent=0 // pred_fallthru
    _
  // Predicated region
  $region34: #{node2vec_forward.3} parent=0 // pred_check
    _
  $region35: #{node2vec_forward.3} parent=0 // pred_check_branch
    %302 = sbr.rel (0) target = $region37
  $region36: #{node2vec_forward.3} parent=0 // pred_region
    _
  $region37: #{node2vec_forward.3} parent=0 // pred_fallthru
    _

// kernel: node2vec_forward.2
$region0: #{node2vec_forward.2}
  #allocation0 [shape = 'u32[]', space=smem, size = 0x4, offset = 0x4, fixed_abs, tag = 'smem constant byte address 0x4 - core index']
  #allocation1 [shape = 'u32[144,128]{1,0:T(1,128)}', space=vmem, size = 0x12000, scoped, tag = 'internal scratch']
  %s0 = inlined_call_operand.vmem [shape: bf16[16,128], index: 0, kind: input, shape index: {}]
  %s1 = inlined_call_operand.vmem [shape: bf16[16,128], index: 1, kind: input, shape index: {}]
  %s2 = inlined_call_operand.vmem [shape: f32[16,1], index: 2, kind: input, shape index: {}]
  %s3 = inlined_call_operand.vmem [shape: bf16[128,128], index: 3, kind: input, shape index: {}]
  %s4 = inlined_call_operand.vmem [shape: f32[1,128], index: 4, kind: input, shape index: {}]
  %s5 = inlined_call_operand.vmem [shape: bf16[128,128], index: 5, kind: input, shape index: {}]
  %s6 = inlined_call_operand.vmem [shape: f32[1,128], index: 6, kind: input, shape index: {}]
  %s7 = inlined_call_operand.vmem [shape: bf16[128,128], index: 7, kind: input, shape index: {}]
  %s8 = inlined_call_operand.vmem [shape: f32[1,128], index: 8, kind: input, shape index: {}]
  %s9 = inlined_call_operand.vmem [shape: bf16[128,128], index: 9, kind: input, shape index: {}]
  %s10 = inlined_call_operand.vmem [shape: f32[1,128], index: 10, kind: input, shape index: {}]
  %s11 = inlined_call_operand.vmem [shape: bf16[16,128], index: 11, kind: output, shape index: {}]
  %s12 = sld [smem:[#allocation0]]
  $region54: #{node2vec_forward.2} parent=0
    _
  %s14 = ssub.s32 1, %s12
  %s15 = scalar_select 0, %s14, %s12
  // Predicated region
  $region2: #{node2vec_forward.2} parent=0 // pred_check
    _
  $region3: #{node2vec_forward.2} parent=0 // pred_check_branch
    %17 = sbr.rel (0) target = $region5
  $region4: #{node2vec_forward.2} parent=0 // pred_region
    _
  $region5: #{node2vec_forward.2} parent=0 // pred_fallthru
    _
  // Predicated region
  $region6: #{node2vec_forward.2} parent=0 // pred_check
    _
  $region7: #{node2vec_forward.2} parent=0 // pred_check_branch
    %19 = sbr.rel (0) target = $region9
  $region8: #{node2vec_forward.2} parent=0 // pred_region
    _
  $region9: #{node2vec_forward.2} parent=0 // pred_fallthru
    _
  // Predicated region
  $region10: #{node2vec_forward.2} parent=0 // pred_check
    _
  $region11: #{node2vec_forward.2} parent=0 // pred_check_branch
    %21 = sbr.rel (0) target = $region13
  $region12: #{node2vec_forward.2} parent=0 // pred_region
    _
  $region13: #{node2vec_forward.2} parent=0 // pred_fallthru
    _
  // Predicated region
  $region14: #{node2vec_forward.2} parent=0 // pred_check
    _
  $region15: #{node2vec_forward.2} parent=0 // pred_check_branch
    %23 = sbr.rel (0) target = $region17
  $region16: #{node2vec_forward.2} parent=0 // pred_region
    _
  $region17: #{node2vec_forward.2} parent=0 // pred_fallthru
    _
  // Predicated region
  $region18: #{node2vec_forward.2} parent=0 // pred_check
    _
  $region19: #{node2vec_forward.2} parent=0 // pred_check_branch
    %25 = sbr.rel (0) target = $region21
  $region20: #{node2vec_forward.2} parent=0 // pred_region
    _
  $region21: #{node2vec_forward.2} parent=0 // pred_fallthru
    _
  // Predicated region
  $region22: #{node2vec_forward.2} parent=0 // pred_check
    _
  $region23: #{node2vec_forward.2} parent=0 // pred_check_branch
    %27 = sbr.rel (0) target = $region25
  $region24: #{node2vec_forward.2} parent=0 // pred_region
    _
  $region25: #{node2vec_forward.2} parent=0 // pred_fallthru
    _
  // Predicated region
  $region26: #{node2vec_forward.2} parent=0 // pred_check
    _
  $region27: #{node2vec_forward.2} parent=0 // pred_check_branch
    %29 = sbr.rel (0) target = $region29
  $region28: #{node2vec_forward.2} parent=0 // pred_region
    _
  $region29: #{node2vec_forward.2} parent=0 // pred_fallthru
    _
  // Predicated region
  $region30: #{node2vec_forward.2} parent=0 // pred_check
    _
  $region31: #{node2vec_forward.2} parent=0 // pred_check_branch
    %31 = sbr.rel (0) target = $region33
  $region32: #{node2vec_forward.2} parent=0 // pred_region
    _
  $region33: #{node2vec_forward.2} parent=0 // pred_fallthru
    _
  // Predicated region
  $region34: #{node2vec_forward.2} parent=0 // pred_check
    _
  $region35: #{node2vec_forward.2} parent=0 // pred_check_branch
    %33 = sbr.rel (0) target = $region37
  $region36: #{node2vec_forward.2} parent=0 // pred_region
    _
  $region37: #{node2vec_forward.2} parent=0 // pred_fallthru
    _
  // Predicated region
  $region38: #{node2vec_forward.2} parent=0 // pred_check
    _
  $region39: #{node2vec_forward.2} parent=0 // pred_check_branch
    %35 = sbr.rel (0) target = $region41
  $region40: #{node2vec_forward.2} parent=0 // pred_region
    _
  $region41: #{node2vec_forward.2} parent=0 // pred_fallthru
    _
  // Predicated region
  $region42: #{node2vec_forward.2} parent=0 // pred_check
    _
  $region43: #{node2vec_forward.2} parent=0 // pred_check_branch
    %37 = sbr.rel (0) target = $region45
  $region44: #{node2vec_forward.2} parent=0 // pred_region
    _
  $region45: #{node2vec_forward.2} parent=0 // pred_fallthru
    _
  %v39 = vld [vmem:[%s0] sm:$0xf]
  %v40 = vld [vmem:[%s0 + $0x4] sm:$0xf]
  %v41 = vld [vmem:[%s3] sm:$0xf]
  %v42 = vld [vmem:[%s3 + $0x4] sm:$0xf]
  %v43 = vld [vmem:[%s3 + $0x8] sm:$0xf]
  %v44 = vld [vmem:[%s3 + $0xc] sm:$0xf]
  %v45 = vld [vmem:[%s3 + $0x10] sm:$0xf]
  %v46 = vld [vmem:[%s3 + $0x14] sm:$0xf]
  %v47 = vld [vmem:[%s3 + $0x18] sm:$0xf]
  %v48 = vld [vmem:[%s3 + $0x1c] sm:$0xf]
  %v49 = vld [vmem:[%s3 + $0x20] sm:$0xf]
  %v50 = vld [vmem:[%s3 + $0x24] sm:$0xf]
  %v51 = vld [vmem:[%s3 + $0x28] sm:$0xf]
  %v52 = vld [vmem:[%s3 + $0x2c] sm:$0xf]
  %v53 = vld [vmem:[%s3 + $0x30] sm:$0xf]
  %v54 = vld [vmem:[%s3 + $0x34] sm:$0xf]
  %v55 = vld [vmem:[%s3 + $0x38] sm:$0xf]
  %v56 = vld [vmem:[%s3 + $0x3c] sm:$0xf]
  %v57 = vld [vmem:[%s4] sm:$0x1]
  %v59 = vlaneseq
  %v60 = vshrl.u32 %v59, 7
  %v61 = vsub.s32 0, %v60
  %v62 = vrot.slane %v57, %v61
  %v66 = vunpack.c.l.b16 %v39
  %v67 = vunpack.c.l.b16 %v40
  %v68 = vpack.c.b16 %v67, %v66
  %v86 = vunpack.c.l.b16 %v41
  %v87 = vunpack.c.l.b16 %v42
  %v88 = vunpack.c.l.b16 %v43
  %v89 = vunpack.c.l.b16 %v44
  %v90 = vunpack.c.l.b16 %v45
  %v91 = vunpack.c.l.b16 %v46
  %v92 = vunpack.c.l.b16 %v47
  %v93 = vunpack.c.l.b16 %v48
  %v94 = vunpack.c.l.b16 %v49
  %v95 = vunpack.c.l.b16 %v50
  %v96 = vunpack.c.l.b16 %v51
  %v97 = vunpack.c.l.b16 %v52
  %v98 = vunpack.c.l.b16 %v53
  %v99 = vunpack.c.l.b16 %v54
  %v100 = vunpack.c.l.b16 %v55
  %v101 = vunpack.c.l.b16 %v56
  %v102 = vpack.c.b16 %v87, %v86
  %v103 = vpack.c.b16 %v89, %v88
  %v104 = vpack.c.b16 %v91, %v90
  %v105 = vpack.c.b16 %v93, %v92
  %v106 = vpack.c.b16 %v95, %v94
  %v107 = vpack.c.b16 %v97, %v96
  %v108 = vpack.c.b16 %v99, %v98
  %v109 = vpack.c.b16 %v101, %v100
  %118 = vmatprep.subr.bf16.mxu0 0
  %119 = vmatpush1.bf16.msra.mxu0 %v109
  %120 = vmatprep.subr.bf16.mxu0 0
  %121 = vmatpush1.bf16.msra.mxu0 %v108
  %122 = vmatprep.subr.bf16.mxu0 0
  %123 = vmatpush1.bf16.msra.mxu0 %v107
  %124 = vmatprep.subr.bf16.mxu0 0
  %125 = vmatpush1.bf16.msra.mxu0 %v106
  %126 = vmatprep.subr.bf16.mxu0 0
  %127 = vmatpush1.bf16.msra.mxu0 %v105
  %128 = vmatprep.subr.bf16.mxu0 0
  %129 = vmatpush1.bf16.msra.mxu0 %v104
  %130 = vmatprep.subr.bf16.mxu0 0
  %131 = vmatpush1.bf16.msra.mxu0 %v103
  %132 = vmatprep.subr.bf16.mxu0 0
  %133 = vmatpush1.bf16.msra.mxu0 %v102
  %134 = vmatprep.subr.bf16.mxu0 0
  %135 = vmatpush2.bf16.msra.mxu0 0
  %136 = vmatprep.subr.bf16.mxu0 0
  %137 = vmatpush2.bf16.msra.mxu0 0
  %138 = vmatprep.subr.bf16.mxu0 0
  %139 = vmatpush2.bf16.msra.mxu0 0
  %140 = vmatprep.subr.bf16.mxu0 0
  %141 = vmatpush2.bf16.msra.mxu0 0
  %142 = vmatprep.subr.bf16.mxu0 0
  %143 = vmatpush2.bf16.msra.mxu0 0
  %144 = vmatprep.subr.bf16.mxu0 0
  %145 = vmatpush2.bf16.msra.mxu0 0
  %146 = vmatprep.subr.bf16.mxu0 0
  %147 = vmatpush2.bf16.msra.mxu0 0
  %148 = vmatprep.subr.bf16.mxu0 0
  %149 = vmatpush2.bf16.msra.mxu0 0
  %150 = vmatprep.mubr.bf16.mxu0 0
  %151 = vmatmul.mubr.bf16.gmra.mxu0 %v68
  %v152 = vpop.f32.mrf.mxu0
  %v153 = vadd.f32 %v62, %v152
  %v154 = vpop.f32.mrf.mxu0
  %v155 = vpop.f32.mrf.mxu0
  %v156 = vadd.f32 %v62, %v155
  %v157 = vpop.f32.mrf.mxu0
  %158 = vdwg.mxu0
  %v159 = vxor.u32 %v153, 2147483648
  %v160 = vxor.u32 %v156, 2147483648
  %v161 = vmul.f32 %v159, 1.442695
  %v162 = vpow.pop %v161
  %v163 = vmul.f32 %v160, 1.442695
  %v164 = vpow.pop %v163
  %v165 = vadd.f32 %v162, 1.0
  %v166 = vadd.f32 %v164, 1.0
  %v167 = vrcp.pop %v165
  %v168 = vmul.f32 1.0, %v167
  %v169 = vrcp.pop %v166
  %v170 = vmul.f32 1.0, %v169
  %v171 = vmul.f32 %v153, %v168
  %v172 = vmul.f32 %v156, %v170
  %v173 = vpack.c.bf16 %v172, %v171
  %v174 = vld [vmem:[%s5] sm:$0xf]
  %v175 = vld [vmem:[%s5 + $0x4] sm:$0xf]
  %v176 = vld [vmem:[%s5 + $0x8] sm:$0xf]
  %v177 = vld [vmem:[%s5 + $0xc] sm:$0xf]
  %v178 = vld [vmem:[%s5 + $0x10] sm:$0xf]
  %v179 = vld [vmem:[%s5 + $0x14] sm:$0xf]
  %v180 = vld [vmem:[%s5 + $0x18] sm:$0xf]
  %v181 = vld [vmem:[%s5 + $0x1c] sm:$0xf]
  %v182 = vld [vmem:[%s5 + $0x20] sm:$0xf]
  %v183 = vld [vmem:[%s5 + $0x24] sm:$0xf]
  %v184 = vld [vmem:[%s5 + $0x28] sm:$0xf]
  %v185 = vld [vmem:[%s5 + $0x2c] sm:$0xf]
  %v186 = vld [vmem:[%s5 + $0x30] sm:$0xf]
  %v187 = vld [vmem:[%s5 + $0x34] sm:$0xf]
  %v188 = vld [vmem:[%s5 + $0x38] sm:$0xf]
  %v189 = vld [vmem:[%s5 + $0x3c] sm:$0xf]
  %v190 = vld [vmem:[%s1] sm:$0xf]
  %v191 = vld [vmem:[%s1 + $0x4] sm:$0xf]
  %v192 = vunpack.c.l.bf16 %v190
  %v193 = vunpack.c.l.bf16 %v191
  %v210 = vunpack.c.l.b16 %v174
  %v211 = vunpack.c.l.b16 %v175
  %v212 = vunpack.c.l.b16 %v176
  %v213 = vunpack.c.l.b16 %v177
  %v214 = vunpack.c.l.b16 %v178
  %v215 = vunpack.c.l.b16 %v179
  %v216 = vunpack.c.l.b16 %v180
  %v217 = vunpack.c.l.b16 %v181
  %v218 = vunpack.c.l.b16 %v182
  %v219 = vunpack.c.l.b16 %v183
  %v220 = vunpack.c.l.b16 %v184
  %v221 = vunpack.c.l.b16 %v185
  %v222 = vunpack.c.l.b16 %v186
  %v223 = vunpack.c.l.b16 %v187
  %v224 = vunpack.c.l.b16 %v188
  %v225 = vunpack.c.l.b16 %v189
  %v226 = vpack.c.b16 %v211, %v210
  %v227 = vpack.c.b16 %v213, %v212
  %v228 = vpack.c.b16 %v215, %v214
  %v229 = vpack.c.b16 %v217, %v216
  %v230 = vpack.c.b16 %v219, %v218
  %v231 = vpack.c.b16 %v221, %v220
  %v232 = vpack.c.b16 %v223, %v222
  %v233 = vpack.c.b16 %v225, %v224
  %242 = vmatprep.subr.bf16.mxu0 0
  %243 = vmatpush1.bf16.msra.mxu0 %v233
  %244 = vmatprep.subr.bf16.mxu0 0
  %245 = vmatpush1.bf16.msra.mxu0 %v232
  %246 = vmatprep.subr.bf16.mxu0 0
  %247 = vmatpush1.bf16.msra.mxu0 %v231
  %248 = vmatprep.subr.bf16.mxu0 0
  %249 = vmatpush1.bf16.msra.mxu0 %v230
  %250 = vmatprep.subr.bf16.mxu0 0
  %251 = vmatpush1.bf16.msra.mxu0 %v229
  %252 = vmatprep.subr.bf16.mxu0 0
  %253 = vmatpush1.bf16.msra.mxu0 %v228
  %254 = vmatprep.subr.bf16.mxu0 0
  %255 = vmatpush1.bf16.msra.mxu0 %v227
  %256 = vmatprep.subr.bf16.mxu0 0
  %257 = vmatpush1.bf16.msra.mxu0 %v226
  %258 = vmatprep.subr.bf16.mxu0 0
  %259 = vmatpush2.bf16.msra.mxu0 0
  %260 = vmatprep.subr.bf16.mxu0 0
  %261 = vmatpush2.bf16.msra.mxu0 0
  %262 = vmatprep.subr.bf16.mxu0 0
  %263 = vmatpush2.bf16.msra.mxu0 0
  %264 = vmatprep.subr.bf16.mxu0 0
  %265 = vmatpush2.bf16.msra.mxu0 0
  %266 = vmatprep.subr.bf16.mxu0 0
  %267 = vmatpush2.bf16.msra.mxu0 0
  %268 = vmatprep.subr.bf16.mxu0 0
  %269 = vmatpush2.bf16.msra.mxu0 0
  %270 = vmatprep.subr.bf16.mxu0 0
  %271 = vmatpush2.bf16.msra.mxu0 0
  %272 = vmatprep.subr.bf16.mxu0 0
  %273 = vmatpush2.bf16.msra.mxu0 0
  %274 = vmatprep.mubr.bf16.mxu0 0
  %275 = vmatmul.mubr.bf16.gmra.mxu0 %v173
  %v276 = vpop.f32.mrf.mxu0
  %v277 = vadd.f32 %v192, %v276
  %v278 = vpop.f32.mrf.mxu0
  %v279 = vpop.f32.mrf.mxu0
  %v280 = vadd.f32 %v193, %v279
  %v281 = vpop.f32.mrf.mxu0
  %282 = vdwg.mxu0
  %v283 = vld [vmem:[%s6] sm:$0x1]
  %v285 = vlaneseq
  %v286 = vshrl.u32 %v285, 7
  %v287 = vsub.s32 0, %v286
  %v288 = vrot.slane %v283, %v287
  %v290 = vadd.f32 %v277, %v288
  %v291 = vadd.f32 %v280, %v288
  %v292 = vxor.u32 %v290, 2147483648
  %v293 = vxor.u32 %v291, 2147483648
  %v294 = vmul.f32 %v292, 1.442695
  %v295 = vpow.pop %v294
  %v296 = vmul.f32 %v293, 1.442695
  %v297 = vpow.pop %v296
  %v298 = vadd.f32 %v295, 1.0
  %v299 = vadd.f32 %v297, 1.0
  %v300 = vrcp.pop %v298
  %v301 = vmul.f32 1.0, %v300
  %v302 = vrcp.pop %v299
  %v303 = vmul.f32 1.0, %v302
  %v304 = vmul.f32 %v290, %v301
  %v305 = vmul.f32 %v291, %v303
  %v306 = vpack.c.bf16 %v305, %v304
  %v307 = vld [vmem:[%s7] sm:$0xf]
  %v308 = vld [vmem:[%s7 + $0x4] sm:$0xf]
  %v309 = vld [vmem:[%s7 + $0x8] sm:$0xf]
  %v310 = vld [vmem:[%s7 + $0xc] sm:$0xf]
  %v311 = vld [vmem:[%s7 + $0x10] sm:$0xf]
  %v312 = vld [vmem:[%s7 + $0x14] sm:$0xf]
  %v313 = vld [vmem:[%s7 + $0x18] sm:$0xf]
  %v314 = vld [vmem:[%s7 + $0x1c] sm:$0xf]
  %v315 = vld [vmem:[%s7 + $0x20] sm:$0xf]
  %v316 = vld [vmem:[%s7 + $0x24] sm:$0xf]
  %v317 = vld [vmem:[%s7 + $0x28] sm:$0xf]
  %v318 = vld [vmem:[%s7 + $0x2c] sm:$0xf]
  %v319 = vld [vmem:[%s7 + $0x30] sm:$0xf]
  %v320 = vld [vmem:[%s7 + $0x34] sm:$0xf]
  %v321 = vld [vmem:[%s7 + $0x38] sm:$0xf]
  %v322 = vld [vmem:[%s7 + $0x3c] sm:$0xf]
  %v323 = vld [vmem:[%s8] sm:$0x1]
  %v325 = vlaneseq
  %v326 = vshrl.u32 %v325, 7
  %v327 = vsub.s32 0, %v326
  %v328 = vrot.slane %v323, %v327
  %v346 = vunpack.c.l.b16 %v307
  %v347 = vunpack.c.l.b16 %v308
  %v348 = vunpack.c.l.b16 %v309
  %v349 = vunpack.c.l.b16 %v310
  %v350 = vunpack.c.l.b16 %v311
  %v351 = vunpack.c.l.b16 %v312
  %v352 = vunpack.c.l.b16 %v313
  %v353 = vunpack.c.l.b16 %v314
  %v354 = vunpack.c.l.b16 %v315
  %v355 = vunpack.c.l.b16 %v316
  %v356 = vunpack.c.l.b16 %v317
  %v357 = vunpack.c.l.b16 %v318
  %v358 = vunpack.c.l.b16 %v319
  %v359 = vunpack.c.l.b16 %v320
  %v360 = vunpack.c.l.b16 %v321
  %v361 = vunpack.c.l.b16 %v322
  %v362 = vpack.c.b16 %v347, %v346
  %v363 = vpack.c.b16 %v349, %v348
  %v364 = vpack.c.b16 %v351, %v350
  %v365 = vpack.c.b16 %v353, %v352
  %v366 = vpack.c.b16 %v355, %v354
  %v367 = vpack.c.b16 %v357, %v356
  %v368 = vpack.c.b16 %v359, %v358
  %v369 = vpack.c.b16 %v361, %v360
  %378 = vmatprep.subr.bf16.mxu0 0
  %379 = vmatpush1.bf16.msra.mxu0 %v369
  %380 = vmatprep.subr.bf16.mxu0 0
  %381 = vmatpush1.bf16.msra.mxu0 %v368
  %382 = vmatprep.subr.bf16.mxu0 0
  %383 = vmatpush1.bf16.msra.mxu0 %v367
  %384 = vmatprep.subr.bf16.mxu0 0
  %385 = vmatpush1.bf16.msra.mxu0 %v366
  %386 = vmatprep.subr.bf16.mxu0 0
  %387 = vmatpush1.bf16.msra.mxu0 %v365
  %388 = vmatprep.subr.bf16.mxu0 0
  %389 = vmatpush1.bf16.msra.mxu0 %v364
  %390 = vmatprep.subr.bf16.mxu0 0
  %391 = vmatpush1.bf16.msra.mxu0 %v363
  %392 = vmatprep.subr.bf16.mxu0 0
  %393 = vmatpush1.bf16.msra.mxu0 %v362
  %394 = vmatprep.subr.bf16.mxu0 0
  %395 = vmatpush2.bf16.msra.mxu0 0
  %396 = vmatprep.subr.bf16.mxu0 0
  %397 = vmatpush2.bf16.msra.mxu0 0
  %398 = vmatprep.subr.bf16.mxu0 0
  %399 = vmatpush2.bf16.msra.mxu0 0
  %400 = vmatprep.subr.bf16.mxu0 0
  %401 = vmatpush2.bf16.msra.mxu0 0
  %402 = vmatprep.subr.bf16.mxu0 0
  %403 = vmatpush2.bf16.msra.mxu0 0
  %404 = vmatprep.subr.bf16.mxu0 0
  %405 = vmatpush2.bf16.msra.mxu0 0
  %406 = vmatprep.subr.bf16.mxu0 0
  %407 = vmatpush2.bf16.msra.mxu0 0
  %408 = vmatprep.subr.bf16.mxu0 0
  %409 = vmatpush2.bf16.msra.mxu0 0
  %410 = vmatprep.mubr.bf16.mxu0 0
  %411 = vmatmul.mubr.bf16.gmra.mxu0 %v306
  %v412 = vpop.f32.mrf.mxu0
  %v413 = vadd.f32 %v328, %v412
  %v414 = vpop.f32.mrf.mxu0
  %v415 = vpop.f32.mrf.mxu0
  %v416 = vadd.f32 %v328, %v415
  %v417 = vpop.f32.mrf.mxu0
  %418 = vdwg.mxu0
  %v419 = vxor.u32 %v413, 2147483648
  %v420 = vxor.u32 %v416, 2147483648
  %v421 = vmul.f32 %v419, 1.442695
  %v422 = vpow.pop %v421
  %v423 = vmul.f32 %v420, 1.442695
  %v424 = vpow.pop %v423
  %v425 = vadd.f32 %v422, 1.0
  %v426 = vadd.f32 %v424, 1.0
  %v427 = vrcp.pop %v425
  %v428 = vmul.f32 1.0, %v427
  %v429 = vrcp.pop %v426
  %v430 = vmul.f32 1.0, %v429
  %v431 = vmul.f32 %v413, %v428
  %v432 = vmul.f32 %v416, %v430
  %v433 = vpack.c.bf16 %v432, %v431
  %v434 = vld [vmem:[%s9] sm:$0xf]
  %v435 = vld [vmem:[%s9 + $0x4] sm:$0xf]
  %v436 = vld [vmem:[%s9 + $0x8] sm:$0xf]
  %v437 = vld [vmem:[%s9 + $0xc] sm:$0xf]
  %v438 = vld [vmem:[%s9 + $0x10] sm:$0xf]
  %v439 = vld [vmem:[%s9 + $0x14] sm:$0xf]
  %v440 = vld [vmem:[%s9 + $0x18] sm:$0xf]
  %v441 = vld [vmem:[%s9 + $0x1c] sm:$0xf]
  %v442 = vld [vmem:[%s9 + $0x20] sm:$0xf]
  %v443 = vld [vmem:[%s9 + $0x24] sm:$0xf]
  %v444 = vld [vmem:[%s9 + $0x28] sm:$0xf]
  %v445 = vld [vmem:[%s9 + $0x2c] sm:$0xf]
  %v446 = vld [vmem:[%s9 + $0x30] sm:$0xf]
  %v447 = vld [vmem:[%s9 + $0x34] sm:$0xf]
  %v448 = vld [vmem:[%s9 + $0x38] sm:$0xf]
  %v449 = vld [vmem:[%s9 + $0x3c] sm:$0xf]
  %v450 = vld [vmem:[%s10] sm:$0x1]
  %v452 = vlaneseq
  %v453 = vshrl.u32 %v452, 7
  %v454 = vsub.s32 0, %v453
  %v455 = vrot.slane %v450, %v454
  %v473 = vunpack.c.l.b16 %v434
  %v474 = vunpack.c.l.b16 %v435
  %v475 = vunpack.c.l.b16 %v436
  %v476 = vunpack.c.l.b16 %v437
  %v477 = vunpack.c.l.b16 %v438
  %v478 = vunpack.c.l.b16 %v439
  %v479 = vunpack.c.l.b16 %v440
  %v480 = vunpack.c.l.b16 %v441
  %v481 = vunpack.c.l.b16 %v442
  %v482 = vunpack.c.l.b16 %v443
  %v483 = vunpack.c.l.b16 %v444
  %v484 = vunpack.c.l.b16 %v445
  %v485 = vunpack.c.l.b16 %v446
  %v486 = vunpack.c.l.b16 %v447
  %v487 = vunpack.c.l.b16 %v448
  %v488 = vunpack.c.l.b16 %v449
  %v489 = vpack.c.b16 %v474, %v473
  %v490 = vpack.c.b16 %v476, %v475
  %v491 = vpack.c.b16 %v478, %v477
  %v492 = vpack.c.b16 %v480, %v479
  %v493 = vpack.c.b16 %v482, %v481
  %v494 = vpack.c.b16 %v484, %v483
  %v495 = vpack.c.b16 %v486, %v485
  %v496 = vpack.c.b16 %v488, %v487
  %505 = vmatprep.subr.bf16.mxu0 0
  %506 = vmatpush1.bf16.msra.mxu0 %v496
  %507 = vmatprep.subr.bf16.mxu0 0
  %508 = vmatpush1.bf16.msra.mxu0 %v495
  %509 = vmatprep.subr.bf16.mxu0 0
  %510 = vmatpush1.bf16.msra.mxu0 %v494
  %511 = vmatprep.subr.bf16.mxu0 0
  %512 = vmatpush1.bf16.msra.mxu0 %v493
  %513 = vmatprep.subr.bf16.mxu0 0
  %514 = vmatpush1.bf16.msra.mxu0 %v492
  %515 = vmatprep.subr.bf16.mxu0 0
  %516 = vmatpush1.bf16.msra.mxu0 %v491
  %517 = vmatprep.subr.bf16.mxu0 0
  %518 = vmatpush1.bf16.msra.mxu0 %v490
  %519 = vmatprep.subr.bf16.mxu0 0
  %520 = vmatpush1.bf16.msra.mxu0 %v489
  %521 = vmatprep.subr.bf16.mxu0 0
  %522 = vmatpush2.bf16.msra.mxu0 0
  %523 = vmatprep.subr.bf16.mxu0 0
  %524 = vmatpush2.bf16.msra.mxu0 0
  %525 = vmatprep.subr.bf16.mxu0 0
  %526 = vmatpush2.bf16.msra.mxu0 0
  %527 = vmatprep.subr.bf16.mxu0 0
  %528 = vmatpush2.bf16.msra.mxu0 0
  %529 = vmatprep.subr.bf16.mxu0 0
  %530 = vmatpush2.bf16.msra.mxu0 0
  %531 = vmatprep.subr.bf16.mxu0 0
  %532 = vmatpush2.bf16.msra.mxu0 0
  %533 = vmatprep.subr.bf16.mxu0 0
  %534 = vmatpush2.bf16.msra.mxu0 0
  %535 = vmatprep.subr.bf16.mxu0 0
  %536 = vmatpush2.bf16.msra.mxu0 0
  %537 = vmatprep.mubr.bf16.mxu0 0
  %538 = vmatmul.mubr.bf16.gmra.mxu0 %v433
  %v539 = vpop.f32.mrf.mxu0
  %v540 = vadd.f32 %v455, %v539
  %v541 = vpop.f32.mrf.mxu0
  %v542 = vpop.f32.mrf.mxu0
  %v543 = vadd.f32 %v455, %v542
  %v544 = vpop.f32.mrf.mxu0
  %545 = vdwg.mxu0
  %v546 = vld [vmem:[%s2] sm:$0xff]
  %v547 = vld [vmem:[%s2 + $0x8] sm:$0xff]
  %549 = vset.pattern.permute.xlu0 0
  %550 = vperm.xlu0 %549, %v546
  %v551 = vpop.permute.xlu0 %550
  %554 = vset.pattern.permute.xlu0 0
  %555 = vperm.xlu0 %554, %v547
  %v556 = vpop.permute.xlu0 %555
  %v558 = vmul.f32 %v540, %v551
  %v559 = vmul.f32 %v543, %v556
  %v560 = vpack.c.bf16 %v559, %v558
  %v562 = vunpack.c.l.b16 %v560
  %v563 = vunpack.c.h.b16 %v560
  %v564 = vpack.c.b16 %v562, %v562
  %v565 = vpack.c.b16 %v563, %v563
  %568 = vst [vmem:[%s11] sm:$0xf] %v564
  %569 = vst [vmem:[%s11 + $0x4] sm:$0xf] %v565
  // Predicated region
  $region46: #{node2vec_forward.2} parent=0 // pred_check
    _
  $region47: #{node2vec_forward.2} parent=0 // pred_check_branch
    %571 = sbr.rel (0) target = $region49
  $region48: #{node2vec_forward.2} parent=0 // pred_region
    _
  $region49: #{node2vec_forward.2} parent=0 // pred_fallthru
    _
  // Predicated region
  $region50: #{node2vec_forward.2} parent=0 // pred_check
    _
  $region51: #{node2vec_forward.2} parent=0 // pred_check_branch
    %573 = sbr.rel (0) target = $region53
  $region52: #{node2vec_forward.2} parent=0 // pred_region
    _
  $region53: #{node2vec_forward.2} parent=0 // pred_fallthru
    _

</llo_original>
